<compile_context>
chip_gen: v6e
topology: v6e:2x2x1
jax: 0.10.0
libtpu: 0.0.40
codegen_flags: <defaults>
</compile_context>

<pallas_src>
import functools

import jax
import jax.numpy as jnp
from jax.experimental import pallas as pl
from jax.experimental.pallas import tpu as pltpu

_BETA_START = 0.0001
_BETA_STOP = 0.02


def _ddpm_gather_kernel(t_ref, alpha_ref, beta_out_ref, alpha_out_ref):
    # t_ref:         SMEM (B,) int32  — timestep indices
    # alpha_ref:     SMEM (T,) f32    — cumprod(1 - beta) table
    # beta_out_ref:  SMEM (B,) f32    — beta[t]   (computed analytically)
    # alpha_out_ref: SMEM (B,) f32    — alpha[t]  (SMEM gather)
    b = t_ref.shape[0]
    num_steps = alpha_ref.shape[0]
    beta_start = jnp.float32(_BETA_START)
    beta_step = jnp.float32((_BETA_STOP - _BETA_START) / (num_steps - 1))

    def body(i, carry):
        t_i = t_ref[i]
        # PyTorch-style negative indexing, then clamp (no SMEM bounds check on
        # TPU — an unclamped OOB index would read garbage or fault).
        t_i = jnp.where(t_i < 0, t_i + num_steps, t_i)
        t_i = jnp.clip(t_i, 0, num_steps - 1)
        # Analytic beta: one scalar convert + mul + add on the scalar slots.
        beta_out_ref[i] = beta_start + t_i.astype(jnp.float32) * beta_step
        alpha_out_ref[i] = alpha_ref[t_i]
        return carry

    # Fixed partial unroll: rolled scalar loops pay ~35% branch/induction
    # overhead; full unroll blows up code size for large B.
    jax.lax.fori_loop(0, b, body, 0, unroll=8)


@jax.jit
def _ddpm_forward(t, alpha_table):
    """Jitted wrapper: pallas_call + reshapes fuse into one executable."""
    orig_shape = t.shape
    t_flat = t.reshape(-1)
    b = t_flat.shape[0]
    num_steps = alpha_table.shape[0]

    cost = pl.CostEstimate(
        flops=2 * b,                       # analytic beta FMA per element
        transcendentals=0,
        bytes_accessed=num_steps * 4 + b * 4 + 2 * b * 4,
    )

    beta_t, alpha_t = pl.pallas_call(
        _ddpm_gather_kernel,
        out_shape=(
            jax.ShapeDtypeStruct((b,), jnp.float32),
            jax.ShapeDtypeStruct((b,), jnp.float32),
        ),
        in_specs=[
            pl.BlockSpec(memory_space=pltpu.MemorySpace.SMEM),  # t indices
            pl.BlockSpec(memory_space=pltpu.MemorySpace.SMEM),  # alpha table
        ],
        out_specs=(
            pl.BlockSpec(memory_space=pltpu.MemorySpace.SMEM),
            pl.BlockSpec(memory_space=pltpu.MemorySpace.SMEM),
        ),
        cost_estimate=cost,
    )(t_flat, alpha_table)

    return beta_t.reshape(orig_shape), alpha_t.reshape(orig_shape)


class DDPMSchedulerPallas:
    """JAX/Pallas equivalent of the PyTorch DDPMScheduler module.

    Note: out-of-range timesteps are clamped into [0, T-1] (after one wrap of
    negative indices), matching JAX gather semantics; PyTorch would raise
    IndexError instead.
    """

    def __init__(self, num_time_steps: int = 1000):
        self.num_time_steps = num_time_steps
        # Parameter setup (done once, plain JAX — not part of the forward pass).
        beta = jnp.linspace(_BETA_START, _BETA_STOP, num_time_steps,
                            dtype=jnp.float32)
        self.beta = beta
        # Keep f32: alpha[T-1] ~ 4e-5 would not survive bf16 at rtol=1e-6.
        self.alpha = jnp.cumprod(1.0 - beta)

    def __call__(self, t):
        t = jnp.asarray(t, jnp.int32)
        return _ddpm_forward(t, self.alpha)


if __name__ == "__main__":
    scheduler = DDPMSchedulerPallas(num_time_steps=1000)

    key = jax.random.PRNGKey(0)
    # batch of 8 timestep indices in [0, 1000)
    t = jax.random.randint(key, (8,), 0, scheduler.num_time_steps,
                           dtype=jnp.int32)

    beta_t, alpha_t = scheduler(t)
    jax.block_until_ready((beta_t, alpha_t))

    # pure-JAX reference check
    # (For real perf work on v6e: benchmark with xprof min-of-N over all XLA
    #  Ops events of the jit, not time.perf_counter — at this size everything
    #  is fixed launch/DMA-setup overhead.)
    beta_ref = scheduler.beta[t]
    alpha_ref = scheduler.alpha[t]
    assert beta_t.shape == t.shape and alpha_t.shape == t.shape
    assert jnp.allclose(beta_t, beta_ref, rtol=1e-6, atol=1e-7)
    assert jnp.allclose(alpha_t, alpha_ref, rtol=1e-6, atol=1e-7)

    print("KERNEL_OK")
</pallas_src>

<mosaic_0001>
module attributes {stable_mosaic.version = 11 : i64} {
  func.func @_ddpm_gather_kernel(%arg0: memref<8xi32, #tpu.memory_space<smem>>, %arg1: memref<1000xf32, #tpu.memory_space<smem>>, %arg2: memref<8xf32, #tpu.memory_space<smem>>, %arg3: memref<8xf32, #tpu.memory_space<smem>>) attributes {dimension_semantics = [], scalar_prefetch = 0 : i64, scratch_operands = 0 : i64, tpu.core_type = #tpu.core_type<tc>} {
    %cst = arith.constant 1.99199203E-5 : f32
    %cst_0 = arith.constant 9.99999974E-5 : f32
    %c0_i32 = arith.constant 0 : i32
    %0 = arith.index_cast %c0_i32 : i32 to index
    %1 = memref.load %arg0[%0] : memref<8xi32, #tpu.memory_space<smem>>
    %c0_i32_1 = arith.constant 0 : i32
    %2 = arith.cmpi slt, %1, %c0_i32_1 : i32
    %c1000_i32 = arith.constant 1000 : i32
    %3 = arith.addi %1, %c1000_i32 : i32
    %4 = arith.select %2, %3, %1 : i32
    %c0_i32_2 = arith.constant 0 : i32
    %c999_i32 = arith.constant 999 : i32
    %5 = arith.maxsi %c0_i32_2, %4 : i32
    %6 = arith.minsi %c999_i32, %5 : i32
    %7 = arith.sitofp %6 : i32 to f32
    %8 = arith.mulf %7, %cst : f32
    %9 = arith.addf %cst_0, %8 : f32
    %10 = arith.index_cast %c0_i32 : i32 to index
    %11 = memref.load %arg2[%10] : memref<8xf32, #tpu.memory_space<smem>>
    memref.store %9, %arg2[%10] : memref<8xf32, #tpu.memory_space<smem>>
    %12 = arith.index_cast %6 : i32 to index
    %13 = memref.load %arg1[%12] : memref<1000xf32, #tpu.memory_space<smem>>
    %14 = arith.index_cast %c0_i32 : i32 to index
    %15 = memref.load %arg3[%14] : memref<8xf32, #tpu.memory_space<smem>>
    memref.store %13, %arg3[%14] : memref<8xf32, #tpu.memory_space<smem>>
    %c1_i32 = arith.constant 1 : i32
    %16 = arith.index_cast %c1_i32 : i32 to index
    %17 = memref.load %arg0[%16] : memref<8xi32, #tpu.memory_space<smem>>
    %c0_i32_3 = arith.constant 0 : i32
    %18 = arith.cmpi slt, %17, %c0_i32_3 : i32
    %c1000_i32_4 = arith.constant 1000 : i32
    %19 = arith.addi %17, %c1000_i32_4 : i32
    %20 = arith.select %18, %19, %17 : i32
    %c0_i32_5 = arith.constant 0 : i32
    %c999_i32_6 = arith.constant 999 : i32
    %21 = arith.maxsi %c0_i32_5, %20 : i32
    %22 = arith.minsi %c999_i32_6, %21 : i32
    %23 = arith.sitofp %22 : i32 to f32
    %24 = arith.mulf %23, %cst : f32
    %25 = arith.addf %cst_0, %24 : f32
    %26 = arith.index_cast %c1_i32 : i32 to index
    %27 = memref.load %arg2[%26] : memref<8xf32, #tpu.memory_space<smem>>
    memref.store %25, %arg2[%26] : memref<8xf32, #tpu.memory_space<smem>>
    %28 = arith.index_cast %22 : i32 to index
    %29 = memref.load %arg1[%28] : memref<1000xf32, #tpu.memory_space<smem>>
    %30 = arith.index_cast %c1_i32 : i32 to index
    %31 = memref.load %arg3[%30] : memref<8xf32, #tpu.memory_space<smem>>
    memref.store %29, %arg3[%30] : memref<8xf32, #tpu.memory_space<smem>>
    %c2_i32 = arith.constant 2 : i32
    %32 = arith.index_cast %c2_i32 : i32 to index
    %33 = memref.load %arg0[%32] : memref<8xi32, #tpu.memory_space<smem>>
    %c0_i32_7 = arith.constant 0 : i32
    %34 = arith.cmpi slt, %33, %c0_i32_7 : i32
    %c1000_i32_8 = arith.constant 1000 : i32
    %35 = arith.addi %33, %c1000_i32_8 : i32
    %36 = arith.select %34, %35, %33 : i32
    %c0_i32_9 = arith.constant 0 : i32
    %c999_i32_10 = arith.constant 999 : i32
    %37 = arith.maxsi %c0_i32_9, %36 : i32
    %38 = arith.minsi %c999_i32_10, %37 : i32
    %39 = arith.sitofp %38 : i32 to f32
    %40 = arith.mulf %39, %cst : f32
    %41 = arith.addf %cst_0, %40 : f32
    %42 = arith.index_cast %c2_i32 : i32 to index
    %43 = memref.load %arg2[%42] : memref<8xf32, #tpu.memory_space<smem>>
    memref.store %41, %arg2[%42] : memref<8xf32, #tpu.memory_space<smem>>
    %44 = arith.index_cast %38 : i32 to index
    %45 = memref.load %arg1[%44] : memref<1000xf32, #tpu.memory_space<smem>>
    %46 = arith.index_cast %c2_i32 : i32 to index
    %47 = memref.load %arg3[%46] : memref<8xf32, #tpu.memory_space<smem>>
    memref.store %45, %arg3[%46] : memref<8xf32, #tpu.memory_space<smem>>
    %c3_i32 = arith.constant 3 : i32
    %48 = arith.index_cast %c3_i32 : i32 to index
    %49 = memref.load %arg0[%48] : memref<8xi32, #tpu.memory_space<smem>>
    %c0_i32_11 = arith.constant 0 : i32
    %50 = arith.cmpi slt, %49, %c0_i32_11 : i32
    %c1000_i32_12 = arith.constant 1000 : i32
    %51 = arith.addi %49, %c1000_i32_12 : i32
    %52 = arith.select %50, %51, %49 : i32
    %c0_i32_13 = arith.constant 0 : i32
    %c999_i32_14 = arith.constant 999 : i32
    %53 = arith.maxsi %c0_i32_13, %52 : i32
    %54 = arith.minsi %c999_i32_14, %53 : i32
    %55 = arith.sitofp %54 : i32 to f32
    %56 = arith.mulf %55, %cst : f32
    %57 = arith.addf %cst_0, %56 : f32
    %58 = arith.index_cast %c3_i32 : i32 to index
    %59 = memref.load %arg2[%58] : memref<8xf32, #tpu.memory_space<smem>>
    memref.store %57, %arg2[%58] : memref<8xf32, #tpu.memory_space<smem>>
    %60 = arith.index_cast %54 : i32 to index
    %61 = memref.load %arg1[%60] : memref<1000xf32, #tpu.memory_space<smem>>
    %62 = arith.index_cast %c3_i32 : i32 to index
    %63 = memref.load %arg3[%62] : memref<8xf32, #tpu.memory_space<smem>>
    memref.store %61, %arg3[%62] : memref<8xf32, #tpu.memory_space<smem>>
    %c4_i32 = arith.constant 4 : i32
    %64 = arith.index_cast %c4_i32 : i32 to index
    %65 = memref.load %arg0[%64] : memref<8xi32, #tpu.memory_space<smem>>
    %c0_i32_15 = arith.constant 0 : i32
    %66 = arith.cmpi slt, %65, %c0_i32_15 : i32
    %c1000_i32_16 = arith.constant 1000 : i32
    %67 = arith.addi %65, %c1000_i32_16 : i32
    %68 = arith.select %66, %67, %65 : i32
    %c0_i32_17 = arith.constant 0 : i32
    %c999_i32_18 = arith.constant 999 : i32
    %69 = arith.maxsi %c0_i32_17, %68 : i32
    %70 = arith.minsi %c999_i32_18, %69 : i32
    %71 = arith.sitofp %70 : i32 to f32
    %72 = arith.mulf %71, %cst : f32
    %73 = arith.addf %cst_0, %72 : f32
    %74 = arith.index_cast %c4_i32 : i32 to index
    %75 = memref.load %arg2[%74] : memref<8xf32, #tpu.memory_space<smem>>
    memref.store %73, %arg2[%74] : memref<8xf32, #tpu.memory_space<smem>>
    %76 = arith.index_cast %70 : i32 to index
    %77 = memref.load %arg1[%76] : memref<1000xf32, #tpu.memory_space<smem>>
    %78 = arith.index_cast %c4_i32 : i32 to index
    %79 = memref.load %arg3[%78] : memref<8xf32, #tpu.memory_space<smem>>
    memref.store %77, %arg3[%78] : memref<8xf32, #tpu.memory_space<smem>>
    %c5_i32 = arith.constant 5 : i32
    %80 = arith.index_cast %c5_i32 : i32 to index
    %81 = memref.load %arg0[%80] : memref<8xi32, #tpu.memory_space<smem>>
    %c0_i32_19 = arith.constant 0 : i32
    %82 = arith.cmpi slt, %81, %c0_i32_19 : i32
    %c1000_i32_20 = arith.constant 1000 : i32
    %83 = arith.addi %81, %c1000_i32_20 : i32
    %84 = arith.select %82, %83, %81 : i32
    %c0_i32_21 = arith.constant 0 : i32
    %c999_i32_22 = arith.constant 999 : i32
    %85 = arith.maxsi %c0_i32_21, %84 : i32
    %86 = arith.minsi %c999_i32_22, %85 : i32
    %87 = arith.sitofp %86 : i32 to f32
    %88 = arith.mulf %87, %cst : f32
    %89 = arith.addf %cst_0, %88 : f32
    %90 = arith.index_cast %c5_i32 : i32 to index
    %91 = memref.load %arg2[%90] : memref<8xf32, #tpu.memory_space<smem>>
    memref.store %89, %arg2[%90] : memref<8xf32, #tpu.memory_space<smem>>
    %92 = arith.index_cast %86 : i32 to index
    %93 = memref.load %arg1[%92] : memref<1000xf32, #tpu.memory_space<smem>>
    %94 = arith.index_cast %c5_i32 : i32 to index
    %95 = memref.load %arg3[%94] : memref<8xf32, #tpu.memory_space<smem>>
    memref.store %93, %arg3[%94] : memref<8xf32, #tpu.memory_space<smem>>
    %c6_i32 = arith.constant 6 : i32
    %96 = arith.index_cast %c6_i32 : i32 to index
    %97 = memref.load %arg0[%96] : memref<8xi32, #tpu.memory_space<smem>>
    %c0_i32_23 = arith.constant 0 : i32
    %98 = arith.cmpi slt, %97, %c0_i32_23 : i32
    %c1000_i32_24 = arith.constant 1000 : i32
    %99 = arith.addi %97, %c1000_i32_24 : i32
    %100 = arith.select %98, %99, %97 : i32
    %c0_i32_25 = arith.constant 0 : i32
    %c999_i32_26 = arith.constant 999 : i32
    %101 = arith.maxsi %c0_i32_25, %100 : i32
    %102 = arith.minsi %c999_i32_26, %101 : i32
    %103 = arith.sitofp %102 : i32 to f32
    %104 = arith.mulf %103, %cst : f32
    %105 = arith.addf %cst_0, %104 : f32
    %106 = arith.index_cast %c6_i32 : i32 to index
    %107 = memref.load %arg2[%106] : memref<8xf32, #tpu.memory_space<smem>>
    memref.store %105, %arg2[%106] : memref<8xf32, #tpu.memory_space<smem>>
    %108 = arith.index_cast %102 : i32 to index
    %109 = memref.load %arg1[%108] : memref<1000xf32, #tpu.memory_space<smem>>
    %110 = arith.index_cast %c6_i32 : i32 to index
    %111 = memref.load %arg3[%110] : memref<8xf32, #tpu.memory_space<smem>>
    memref.store %109, %arg3[%110] : memref<8xf32, #tpu.memory_space<smem>>
    %c7_i32 = arith.constant 7 : i32
    %112 = arith.index_cast %c7_i32 : i32 to index
    %113 = memref.load %arg0[%112] : memref<8xi32, #tpu.memory_space<smem>>
    %c0_i32_27 = arith.constant 0 : i32
    %114 = arith.cmpi slt, %113, %c0_i32_27 : i32
    %c1000_i32_28 = arith.constant 1000 : i32
    %115 = arith.addi %113, %c1000_i32_28 : i32
    %116 = arith.select %114, %115, %113 : i32
    %c0_i32_29 = arith.constant 0 : i32
    %c999_i32_30 = arith.constant 999 : i32
    %117 = arith.maxsi %c0_i32_29, %116 : i32
    %118 = arith.minsi %c999_i32_30, %117 : i32
    %119 = arith.sitofp %118 : i32 to f32
    %120 = arith.mulf %119, %cst : f32
    %121 = arith.addf %cst_0, %120 : f32
    %122 = arith.index_cast %c7_i32 : i32 to index
    %123 = memref.load %arg2[%122] : memref<8xf32, #tpu.memory_space<smem>>
    memref.store %121, %arg2[%122] : memref<8xf32, #tpu.memory_space<smem>>
    %124 = arith.index_cast %118 : i32 to index
    %125 = memref.load %arg1[%124] : memref<1000xf32, #tpu.memory_space<smem>>
    %126 = arith.index_cast %c7_i32 : i32 to index
    %127 = memref.load %arg3[%126] : memref<8xf32, #tpu.memory_space<smem>>
    memref.store %125, %arg3[%126] : memref<8xf32, #tpu.memory_space<smem>>
    %c8_i32 = arith.constant 8 : i32
    return
  }
}

</mosaic_0001>

<llo_original>
// kernel: _ddpm_forward.1
$region0: #{_ddpm_forward.1}
  #allocation0 [shape = 'u32[]', space=smem, size = 0x4, offset = 0x4, fixed_abs, tag = 'smem constant byte address 0x4 - core index']
  #allocation1 [shape = 'u32[144,128]{1,0:T(1,128)}', space=vmem, size = 0x12000, scoped, tag = 'internal scratch']
  %s0 = inlined_call_operand.hbm [shape: s32[8], index: 0, kind: input, shape index: {}]
  %s1 = inlined_call_operand.hbm [shape: f32[1000], index: 1, kind: input, shape index: {}]
  %s2 = inlined_call_operand.hbm [shape: f32[8], index: 2, kind: output, shape index: {0}]
  %s3 = inlined_call_operand.hbm [shape: f32[8], index: 3, kind: output, shape index: {1}]
  %4 = xla_tuple %s2, %s3
  %s5 = sld [smem:[#allocation0]]
  $region34: #{_ddpm_forward.1} parent=0
    _
  %s7 = ssub.s32 1, %s5
  %s8 = scalar_select 0, %s7, %s5
  $region1: #{_ddpm_forward.1} parent=0
    #allocation2 [shape = 'u8[512]{0}', space=smem, size = 0x200, scoped, tag = 'input window, operand 0, single buffered']
    #allocation3 [shape = 's32[1]{0}', space=sflag, size = 0x4, scoped, tag = 'scoped memory for _ddpm_forward.1']
    #allocation4 [shape = 's32[1]{0}', space=sflag, size = 0x4, scoped, tag = 'scoped memory for _ddpm_forward.1']
    #allocation5 [shape = 'u8[4096]{0}', space=smem, size = 0x1000, scoped, tag = 'input window, operand 1, single buffered']
    #allocation6 [shape = 's32[1]{0}', space=sflag, size = 0x4, scoped, tag = 'scoped memory for _ddpm_forward.1']
    #allocation7 [shape = 'u8[512]{0}', space=smem, size = 0x200, scoped, tag = 'output window, operand 0, single buffered']
    #allocation8 [shape = 'u8[512]{0}', space=smem, size = 0x200, scoped, tag = 'output window, operand 1, single buffered']
    #allocation9 [shape = 's32[1]{0}', space=sflag, size = 0x4, scoped, tag = 'scoped memory for _ddpm_forward.1']
    %9 = vsyncpa [#allocation3], 0
    %10 = vsyncpa [#allocation6], 0
    %11 = vsyncpa [#allocation4], 0
    %12 = vsyncpa [#allocation9], 0
    // Predicated region
    $region2: #{_ddpm_forward.1} parent=1 // pred_check
      _
    $region3: #{_ddpm_forward.1} parent=1 // pred_check_branch
      %14 = sbr.rel (0) target = $region5
    $region4: #{_ddpm_forward.1} parent=1 // pred_region
      %s16 = ssub.s32 16, 16
      %17 = vsyncadd [#allocation3], %s16
      %20 = dma.hbm_to_smem %s0, 16, [#allocation2], [#allocation3]
    $region5: #{_ddpm_forward.1} parent=1 // pred_fallthru
      _
    // Predicated region
    $region6: #{_ddpm_forward.1} parent=1 // pred_check
      _
    $region7: #{_ddpm_forward.1} parent=1 // pred_check_branch
      %22 = sbr.rel (0) target = $region9
    $region8: #{_ddpm_forward.1} parent=1 // pred_region
      %s24 = ssub.s32 128, 128
      %25 = vsyncadd [#allocation6], %s24
      %28 = dma.hbm_to_smem %s1, 128, [#allocation5], [#allocation6]
    $region9: #{_ddpm_forward.1} parent=1 // pred_fallthru
      _
    // Predicated region
    $region10: #{_ddpm_forward.1} parent=1 // pred_check
      _
    $region11: #{_ddpm_forward.1} parent=1 // pred_check_branch
      %30 = sbr.rel (0) target = $region13
    $region12: #{_ddpm_forward.1} parent=1 // pred_region
      %31 = dma.done [#allocation3], 16
    $region13: #{_ddpm_forward.1} parent=1 // pred_fallthru
      _
    // Predicated region
    $region14: #{_ddpm_forward.1} parent=1 // pred_check
      _
    $region15: #{_ddpm_forward.1} parent=1 // pred_check_branch
      %33 = sbr.rel (0) target = $region17
    $region16: #{_ddpm_forward.1} parent=1 // pred_region
      %34 = dma.done [#allocation6], 128
    $region17: #{_ddpm_forward.1} parent=1 // pred_fallthru
      _
    %35 = sfence
    %s36 = sld [smem:[#allocation2]]
    %p37 = scmp.lt.s32.totalorder %s36, 0
    %s38 = sadd.s32 %s36, 1000
    %s39 = scalar_select %p37, %s38, %s36
    %p40 = scmp.gt.s32.totalorder %s39, 0
    %s41 = scalar_select %p40, %s39, 0
    %p42 = scmp.lt.s32.totalorder %s41, 999
    %s43 = scalar_select %p42, %s41, 999
    %s44 = scvt.s32.f32 %s43
    %s45 = smul.f32 %s44, 1.991992e-05
    %s46 = sadd.f32 %s45, 0.0001
    %s47 = scalar_lea.smem [#allocation7], 0
    %48 = sst [smem:[%s47]] %s46
    %s49 = sld [smem:[#allocation5 + %s43]]
    %s50 = scalar_lea.smem [#allocation8], 0
    %51 = sst [smem:[%s50]] %s49
    %s52 = sld [smem:[#allocation2 + $0x1]]
    %p53 = scmp.lt.s32.totalorder %s52, 0
    %s54 = sadd.s32 %s52, 1000
    %s55 = scalar_select %p53, %s54, %s52
    %p56 = scmp.gt.s32.totalorder %s55, 0
    %s57 = scalar_select %p56, %s55, 0
    %p58 = scmp.lt.s32.totalorder %s57, 999
    %s59 = scalar_select %p58, %s57, 999
    %s60 = scvt.s32.f32 %s59
    %s61 = smul.f32 %s60, 1.991992e-05
    %s62 = sadd.f32 %s61, 0.0001
    %s63 = scalar_lea.smem [#allocation7], 1
    %64 = sst [smem:[%s63]] %s62
    %s65 = sld [smem:[#allocation5 + %s59]]
    %s66 = scalar_lea.smem [#allocation8], 1
    %67 = sst [smem:[%s66]] %s65
    %s68 = sld [smem:[#allocation2 + $0x2]]
    %p69 = scmp.lt.s32.totalorder %s68, 0
    %s70 = sadd.s32 %s68, 1000
    %s71 = scalar_select %p69, %s70, %s68
    %p72 = scmp.gt.s32.totalorder %s71, 0
    %s73 = scalar_select %p72, %s71, 0
    %p74 = scmp.lt.s32.totalorder %s73, 999
    %s75 = scalar_select %p74, %s73, 999
    %s76 = scvt.s32.f32 %s75
    %s77 = smul.f32 %s76, 1.991992e-05
    %s78 = sadd.f32 %s77, 0.0001
    %s79 = scalar_lea.smem [#allocation7], 2
    %80 = sst [smem:[%s79]] %s78
    %s81 = sld [smem:[#allocation5 + %s75]]
    %s82 = scalar_lea.smem [#allocation8], 2
    %83 = sst [smem:[%s82]] %s81
    %s84 = sld [smem:[#allocation2 + $0x3]]
    %p85 = scmp.lt.s32.totalorder %s84, 0
    %s86 = sadd.s32 %s84, 1000
    %s87 = scalar_select %p85, %s86, %s84
    %p88 = scmp.gt.s32.totalorder %s87, 0
    %s89 = scalar_select %p88, %s87, 0
    %p90 = scmp.lt.s32.totalorder %s89, 999
    %s91 = scalar_select %p90, %s89, 999
    %s92 = scvt.s32.f32 %s91
    %s93 = smul.f32 %s92, 1.991992e-05
    %s94 = sadd.f32 %s93, 0.0001
    %s95 = scalar_lea.smem [#allocation7], 3
    %96 = sst [smem:[%s95]] %s94
    %s97 = sld [smem:[#allocation5 + %s91]]
    %s98 = scalar_lea.smem [#allocation8], 3
    %99 = sst [smem:[%s98]] %s97
    %s100 = sld [smem:[#allocation2 + $0x4]]
    %p101 = scmp.lt.s32.totalorder %s100, 0
    %s102 = sadd.s32 %s100, 1000
    %s103 = scalar_select %p101, %s102, %s100
    %p104 = scmp.gt.s32.totalorder %s103, 0
    %s105 = scalar_select %p104, %s103, 0
    %p106 = scmp.lt.s32.totalorder %s105, 999
    %s107 = scalar_select %p106, %s105, 999
    %s108 = scvt.s32.f32 %s107
    %s109 = smul.f32 %s108, 1.991992e-05
    %s110 = sadd.f32 %s109, 0.0001
    %s111 = scalar_lea.smem [#allocation7], 4
    %112 = sst [smem:[%s111]] %s110
    %s113 = sld [smem:[#allocation5 + %s107]]
    %s114 = scalar_lea.smem [#allocation8], 4
    %115 = sst [smem:[%s114]] %s113
    %s116 = sld [smem:[#allocation2 + $0x5]]
    %p117 = scmp.lt.s32.totalorder %s116, 0
    %s118 = sadd.s32 %s116, 1000
    %s119 = scalar_select %p117, %s118, %s116
    %p120 = scmp.gt.s32.totalorder %s119, 0
    %s121 = scalar_select %p120, %s119, 0
    %p122 = scmp.lt.s32.totalorder %s121, 999
    %s123 = scalar_select %p122, %s121, 999
    %s124 = scvt.s32.f32 %s123
    %s125 = smul.f32 %s124, 1.991992e-05
    %s126 = sadd.f32 %s125, 0.0001
    %s127 = scalar_lea.smem [#allocation7], 5
    %128 = sst [smem:[%s127]] %s126
    %s129 = sld [smem:[#allocation5 + %s123]]
    %s130 = scalar_lea.smem [#allocation8], 5
    %131 = sst [smem:[%s130]] %s129
    %s132 = sld [smem:[#allocation2 + $0x6]]
    %p133 = scmp.lt.s32.totalorder %s132, 0
    %s134 = sadd.s32 %s132, 1000
    %s135 = scalar_select %p133, %s134, %s132
    %p136 = scmp.gt.s32.totalorder %s135, 0
    %s137 = scalar_select %p136, %s135, 0
    %p138 = scmp.lt.s32.totalorder %s137, 999
    %s139 = scalar_select %p138, %s137, 999
    %s140 = scvt.s32.f32 %s139
    %s141 = smul.f32 %s140, 1.991992e-05
    %s142 = sadd.f32 %s141, 0.0001
    %s143 = scalar_lea.smem [#allocation7], 6
    %144 = sst [smem:[%s143]] %s142
    %s145 = sld [smem:[#allocation5 + %s139]]
    %s146 = scalar_lea.smem [#allocation8], 6
    %147 = sst [smem:[%s146]] %s145
    %s148 = sld [smem:[#allocation2 + $0x7]]
    %p149 = scmp.lt.s32.totalorder %s148, 0
    %s150 = sadd.s32 %s148, 1000
    %s151 = scalar_select %p149, %s150, %s148
    %p152 = scmp.gt.s32.totalorder %s151, 0
    %s153 = scalar_select %p152, %s151, 0
    %p154 = scmp.lt.s32.totalorder %s153, 999
    %s155 = scalar_select %p154, %s153, 999
    %s156 = scvt.s32.f32 %s155
    %s157 = smul.f32 %s156, 1.991992e-05
    %s158 = sadd.f32 %s157, 0.0001
    %s159 = scalar_lea.smem [#allocation7], 7
    %160 = sst [smem:[%s159]] %s158
    %s161 = sld [smem:[#allocation5 + %s155]]
    %s162 = scalar_lea.smem [#allocation8], 7
    %163 = sst [smem:[%s162]] %s161
    // Predicated region
    $region18: #{_ddpm_forward.1} parent=1 // pred_check
      _
    $region19: #{_ddpm_forward.1} parent=1 // pred_check_branch
      %165 = sbr.rel (0) target = $region21
    $region20: #{_ddpm_forward.1} parent=1 // pred_region
      %s167 = ssub.s32 16, 16
      %168 = vsyncadd [#allocation4], %s167
      %171 = dma.smem_to_hbm [#allocation7], 16, %s2, [#allocation4]
    $region21: #{_ddpm_forward.1} parent=1 // pred_fallthru
      _
    // Predicated region
    $region22: #{_ddpm_forward.1} parent=1 // pred_check
      _
    $region23: #{_ddpm_forward.1} parent=1 // pred_check_branch
      %173 = sbr.rel (0) target = $region25
    $region24: #{_ddpm_forward.1} parent=1 // pred_region
      %s175 = ssub.s32 16, 16
      %176 = vsyncadd [#allocation9], %s175
      %179 = dma.smem_to_hbm [#allocation8], 16, %s3, [#allocation9]
    $region25: #{_ddpm_forward.1} parent=1 // pred_fallthru
      _
    // Predicated region
    $region26: #{_ddpm_forward.1} parent=1 // pred_check
      _
    $region27: #{_ddpm_forward.1} parent=1 // pred_check_branch
      %181 = sbr.rel (0) target = $region29
    $region28: #{_ddpm_forward.1} parent=1 // pred_region
      %182 = dma.done [#allocation4], 16
    $region29: #{_ddpm_forward.1} parent=1 // pred_fallthru
      _
    // Predicated region
    $region30: #{_ddpm_forward.1} parent=1 // pred_check
      _
    $region31: #{_ddpm_forward.1} parent=1 // pred_check_branch
      %184 = sbr.rel (0) target = $region33
    $region32: #{_ddpm_forward.1} parent=1 // pred_region
      %185 = dma.done [#allocation9], 16
    $region33: #{_ddpm_forward.1} parent=1 // pred_fallthru
      _
    %186 = sfence
    %187 = vsyncpa [#allocation3], 1
    %188 = vsyncpa [#allocation6], 1
    %189 = vsyncpa [#allocation4], 1
    %190 = vsyncpa [#allocation9], 1

</llo_original>
